<compile_context>
chip_gen: v6e
topology: v6e:2x2x1
jax: 0.10.0
libtpu: 0.0.40
codegen_flags: <defaults>
</compile_context>

<pallas_src>
import jax
import jax.numpy as jnp
from jax.experimental import pallas as pl
from jax.experimental.pallas import tpu as pltpu


_LOGIT_001 = -4.59511985013459   # log(0.01 / 0.99)
_LOGIT_099 = 4.59511985013459    # log(0.99 / 0.01)


def _view_learner_kernel(feat_ref, w1_ref, b1_ref, w2_ref, b2_ref,
                         l1_ref, l2_ref, out_ref):
    # feat_ref: (2D, TE) bf16  -- [emb[src]; emb[dst]]^T, edges on the 128-lane axis
    # w1_ref:   (H, 2D) bf16   -- first Linear weight (torch layout)
    # b1_ref:   (H, 1)  f32    -- first Linear bias (column)
    # w2_ref:   (H, 1)  f32    -- second Linear weight (column)
    # b2_ref:   (1,)    f32    -- second Linear bias (SMEM scalar)
    # l1_ref:   (1, TE) f32    -- Gumbel gate noise, already logit(eps)
    # l2_ref:   (1, TE) f32    -- logistic noise, already logit(u2)
    # out_ref:  (1, TE) f32    -- relaxed-Bernoulli sample (weighted adjacency)

    # Linear(2D -> H) + ReLU on the MXU, f32 accumulate; edges stay lane-dense.
    h = jnp.dot(w1_ref[...], feat_ref[...], preferred_element_type=jnp.float32)
    h = jnp.maximum(h + b1_ref[...], 0.0)                                  # (H, TE)

    # Linear(H -> 1) as a sublane reduction; result is lane-dense (1, TE).
    logits = jnp.sum(h * w2_ref[...], axis=0, keepdims=True) + b2_ref[0]

    # Gumbel-sigmoid gate (temperature = 1.0) then RelaxedBernoulli(0.9).rsample().
    # logit(clamp(sigmoid(g), 0.01, 0.99)) == clamp(g, logit(0.01), logit(0.99)),
    # so the sigmoid -> clamp -> logit round trip is a single VPU clip.
    gate = logits + l1_ref[...]
    rb_logits = jnp.clip(gate, _LOGIT_001, _LOGIT_099)
    sample = jax.nn.sigmoid((rb_logits + l2_ref[...]) * jnp.float32(1.0 / 0.9))

    out_ref[...] = sample


def view_learner_forward(node_emb, src, dst, params, key, *, edge_tile=4096):
    """Returns (weighted_adjacency (E,), keep_mask (E,) bool, src, dst)."""
    w1, b1, w2, b2 = params          # torch layouts: w1 (H, 2D), b1 (H,), w2 (1, H), b2 (1,)
    N, D = node_emb.shape
    E = src.shape[0]
    H = b1.shape[0]
    assert edge_tile % 128 == 0, "edge tile must be lane-aligned (multiple of 128)"

    # Pad edge count up to a tile multiple; tail is truncated after the kernel.
    # NOTE: on v7x prefer e_pad // edge_tile >= 2 so both TensorCores get work.
    n_tiles = pl.cdiv(E, edge_tile)
    e_pad = n_tiles * edge_tile

    # One fused gather: [emb[src]; emb[dst]] -> (E, 2D) -> transpose to (2D, E), bf16 matmul
    # operand with edges on the lane axis.  (XLA fuses gather+concat+cast+transpose; moving
    # the gather in-kernel is a possible future win once this kernel is HBM-bound.)
    feat = jnp.concatenate(
        [jnp.take(node_emb, src, axis=0), jnp.take(node_emb, dst, axis=0)], axis=1)
    feat_t = jnp.transpose(feat).astype(jnp.bfloat16)                      # (2D, E)
    if e_pad != E:
        feat_t = jnp.pad(feat_t, ((0, 0), (0, e_pad - E)))

    # Noise, pre-mapped to logit space (same HBM bytes as shipping raw uniforms, and it leaves
    # only one transcendental — the final sigmoid — inside the kernel).
    k1, k2 = jax.random.split(key)
    bias = 1e-4
    u1 = jax.random.uniform(k1, (1, e_pad), jnp.float32)
    eps = (bias - (1.0 - bias)) * u1 + (1.0 - bias)                        # in (1e-4, 1-1e-4]
    l1 = jnp.log(eps) - jnp.log1p(-eps)
    tiny = jnp.float32(1.1920929e-07)                                      # torch clamp_probs eps
    u2 = jnp.clip(jax.random.uniform(k2, (1, e_pad), jnp.float32), tiny, 1.0 - tiny)
    l2 = jnp.log(u2) - jnp.log1p(-u2)

    w1_b = w1.astype(jnp.bfloat16)                                         # (H, 2D)
    b1_col = b1.reshape(H, 1).astype(jnp.float32)
    w2_col = jnp.reshape(w2, (H, 1)).astype(jnp.float32)
    b2_s = jnp.reshape(b2, (1,)).astype(jnp.float32)

    out = pl.pallas_call(
        _view_learner_kernel,
        out_shape=jax.ShapeDtypeStruct((1, e_pad), jnp.float32),
        grid_spec=pl.GridSpec(
            grid=(n_tiles,),
            in_specs=[
                pl.BlockSpec((2 * D, edge_tile), lambda i: (0, i)),        # edge features^T
                pl.BlockSpec((H, 2 * D), lambda i: (0, 0)),                # W1
                pl.BlockSpec((H, 1), lambda i: (0, 0)),                    # b1
                pl.BlockSpec((H, 1), lambda i: (0, 0)),                    # w2
                pl.BlockSpec(memory_space=pltpu.MemorySpace.SMEM),         # b2 (scalar)
                pl.BlockSpec((1, edge_tile), lambda i: (0, i)),            # logit(eps)
                pl.BlockSpec((1, edge_tile), lambda i: (0, i)),            # logit(u2)
            ],
            out_specs=pl.BlockSpec((1, edge_tile), lambda i: (0, i)),      # lane-dense output
        ),
        compiler_params=pltpu.CompilerParams(
            dimension_semantics=("parallel",)),
    )(feat_t, w1_b, b1_col, w2_col, b2_s, l1, l2)

    weighted = out[0, :E]                      # (E,)
    keep_mask = weighted > 0.0                 # sigmoid output; kept for parity with the module
    # TODO(synk): dgl.graph((src[keep_mask], dst[keep_mask]), num_nodes=N) is a dynamic-shape
    # host-side graph construction with no Pallas equivalent.
    return weighted, keep_mask, src, dst


def init_params(key, input_dim, output_dim):
    """nn.Linear-style init with torch layouts: w1 (H, 2D), b1 (H,), w2 (1, H), b2 (1,)."""
    k1, k2, k3, k4 = jax.random.split(key, 4)
    lim1 = 1.0 / jnp.sqrt(2.0 * input_dim)
    lim2 = 1.0 / jnp.sqrt(1.0 * output_dim)
    w1 = jax.random.uniform(k1, (output_dim, 2 * input_dim), jnp.float32, -lim1, lim1)
    b1 = jax.random.uniform(k2, (output_dim,), jnp.float32, -lim1, lim1)
    w2 = jax.random.uniform(k3, (1, output_dim), jnp.float32, -lim2, lim2)
    b2 = jax.random.uniform(k4, (1,), jnp.float32, -lim2, lim2)
    return w1, b1, w2, b2


if __name__ == "__main__":
    key = jax.random.PRNGKey(0)
    k_emb, k_src, k_dst, k_par, k_noise = jax.random.split(key, 5)

    N = 64            # number of nodes
    D = 32            # input_dim
    H = 32            # output_dim (hidden of the edge MLP)
    E = 1000          # number of edges; deliberately NOT a tile multiple -> exercises padding

    node_emb = jax.random.normal(k_emb, (N, D), jnp.float32)
    src = jax.random.randint(k_src, (E,), 0, N, jnp.int32)
    dst = jax.random.randint(k_dst, (E,), 0, N, jnp.int32)
    params = init_params(k_par, D, H)

    # Small demo tile (pads E -> 1024, grid = 2 so both v7x TensorCores get a tile).
    weighted, keep_mask, fsrc, fdst = view_learner_forward(
        node_emb, src, dst, params, k_noise, edge_tile=512)
    jax.block_until_ready(weighted)
    jax.block_until_ready(keep_mask)

    assert weighted.shape == (E,)
    assert keep_mask.shape == (E,)
    assert fsrc.shape == (E,) and fdst.shape == (E,)
    assert bool(jnp.all(jnp.isfinite(weighted)))
    assert bool(jnp.all((weighted >= 0.0) & (weighted <= 1.0)))
    print("KERNEL_OK")
</pallas_src>

<mosaic_0001>
module attributes {stable_mosaic.version = 11 : i64} {
  func.func @_view_learner_kernel(%arg0: i32, %arg1: memref<64x512xbf16, #tpu.memory_space<vmem>>, %arg2: memref<32x64xbf16, #tpu.memory_space<vmem>>, %arg3: memref<32x1xf32, #tpu.memory_space<vmem>>, %arg4: memref<32x1xf32, #tpu.memory_space<vmem>>, %arg5: memref<1xf32, #tpu.memory_space<smem>>, %arg6: memref<1x512xf32, #tpu.memory_space<vmem>>, %arg7: memref<1x512xf32, #tpu.memory_space<vmem>>, %arg8: memref<1x512xf32, #tpu.memory_space<vmem>>) attributes {dimension_semantics = [#tpu.dimension_semantics<parallel>], iteration_bounds = array<i64: 2>, scalar_prefetch = 0 : i64, scratch_operands = 0 : i64, tpu.core_type = #tpu.core_type<tc>, window_params = [{transform_indices = @transform_0, window_bounds = array<i64: 64, 512>}, {pipeline_mode = #tpu.pipeline_mode<synchronous>, transform_indices = @transform_1, window_bounds = array<i64: 32, 64>}, {pipeline_mode = #tpu.pipeline_mode<synchronous>, transform_indices = @transform_2, window_bounds = array<i64: 32, 1>}, {pipeline_mode = #tpu.pipeline_mode<synchronous>, transform_indices = @transform_3, window_bounds = array<i64: 32, 1>}, {transform_indices = @transform_4, window_bounds = array<i64: 1>}, {transform_indices = @transform_5, window_bounds = array<i64: 1, 512>}, {transform_indices = @transform_6, window_bounds = array<i64: 1, 512>}, {transform_indices = @transform_7, window_bounds = array<i64: 1, 512>}]} {
    %c0 = arith.constant 0 : index
    %c0_0 = arith.constant 0 : index
    %0 = vector.load %arg2[%c0, %c0_0] : memref<32x64xbf16, #tpu.memory_space<vmem>>, vector<32x64xbf16>
    %c0_1 = arith.constant 0 : index
    %c0_2 = arith.constant 0 : index
    %1 = vector.load %arg1[%c0_1, %c0_2] : memref<64x512xbf16, #tpu.memory_space<vmem>>, vector<64x512xbf16>
    %cst = arith.constant dense<0.000000e+00> : vector<32x512xf32>
    %2 = tpu.matmul %0, %1, %cst {dimension_numbers = #tpu.dot_dimension_numbers<[1], [0], [0], [1], [0, 0, 1, 1], [], []>} : vector<32x64xbf16>, vector<64x512xbf16>, vector<32x512xf32> -> vector<32x512xf32>
    %c0_3 = arith.constant 0 : index
    %c0_4 = arith.constant 0 : index
    %3 = vector.load %arg3[%c0_3, %c0_4] : memref<32x1xf32, #tpu.memory_space<vmem>>, vector<32x1xf32>
    %4 = vector.broadcast %3 : vector<32x1xf32> to vector<32x512xf32>
    %5 = arith.addf %2, %4 : vector<32x512xf32>
    %cst_5 = arith.constant 0.000000e+00 : f32
    %6 = vector.broadcast %cst_5 : f32 to vector<32x512xf32>
    %7 = arith.maximumf %5, %6 : vector<32x512xf32>
    %c0_6 = arith.constant 0 : index
    %c0_7 = arith.constant 0 : index
    %8 = vector.load %arg4[%c0_6, %c0_7] : memref<32x1xf32, #tpu.memory_space<vmem>>, vector<32x1xf32>
    %9 = vector.broadcast %8 : vector<32x1xf32> to vector<32x512xf32>
    %10 = arith.mulf %7, %9 : vector<32x512xf32>
    %cst_8 = arith.constant dense<0.000000e+00> : vector<512xf32>
    %11 = vector.multi_reduction <add>, %10, %cst_8 [0] : vector<32x512xf32> to vector<512xf32>
    %12 = vector.shape_cast %11 : vector<512xf32> to vector<1x512xf32>
    %c0_9 = arith.constant 0 : index
    %13 = memref.load %arg5[%c0_9] : memref<1xf32, #tpu.memory_space<smem>>
    %14 = vector.broadcast %13 : f32 to vector<1x512xf32>
    %15 = arith.addf %12, %14 : vector<1x512xf32>
    %c0_10 = arith.constant 0 : index
    %c0_11 = arith.constant 0 : index
    %16 = vector.load %arg6[%c0_10, %c0_11] : memref<1x512xf32, #tpu.memory_space<vmem>>, vector<1x512xf32>
    %17 = arith.addf %15, %16 : vector<1x512xf32>
    %cst_12 = arith.constant -4.595120e+00 : f32
    %cst_13 = arith.constant 4.595120e+00 : f32
    %18 = vector.broadcast %cst_12 : f32 to vector<1x512xf32>
    %19 = arith.maximumf %18, %17 : vector<1x512xf32>
    %20 = vector.broadcast %cst_13 : f32 to vector<1x512xf32>
    %21 = arith.minimumf %20, %19 : vector<1x512xf32>
    %c0_14 = arith.constant 0 : index
    %c0_15 = arith.constant 0 : index
    %22 = vector.load %arg7[%c0_14, %c0_15] : memref<1x512xf32, #tpu.memory_space<vmem>>, vector<1x512xf32>
    %23 = arith.addf %21, %22 : vector<1x512xf32>
    %cst_16 = arith.constant 1.11111116 : f32
    %24 = vector.broadcast %cst_16 : f32 to vector<1x512xf32>
    %25 = arith.mulf %23, %24 : vector<1x512xf32>
    %26 = arith.negf %25 : vector<1x512xf32>
    %27 = math.exp %26 : vector<1x512xf32>
    %cst_17 = arith.constant 1.000000e+00 : f32
    %28 = vector.broadcast %cst_17 : f32 to vector<1x512xf32>
    %29 = arith.addf %28, %27 : vector<1x512xf32>
    %30 = arith.divf %28, %29 : vector<1x512xf32>
    %c0_18 = arith.constant 0 : index
    %c0_19 = arith.constant 0 : index
    %31 = vector.load %arg8[%c0_18, %c0_19] : memref<1x512xf32, #tpu.memory_space<vmem>>, vector<1x512xf32>
    tpu.vector_store %arg8[%c0_18, %c0_19], %30 {strides = array<i32>} : memref<1x512xf32, #tpu.memory_space<vmem>>, vector<1x512xf32>,
    return
  }
  func.func @transform_0(%arg0: i32) -> (i32, i32) {
    %c0_i32 = arith.constant 0 : i32
    %c0_i32_0 = arith.constant 0 : i32
    return %c0_i32, %arg0 : i32, i32
  }
  func.func @transform_1(%arg0: i32) -> (i32, i32) {
    %c0_i32 = arith.constant 0 : i32
    %c0_i32_0 = arith.constant 0 : i32
    %c0_i32_1 = arith.constant 0 : i32
    return %c0_i32, %c0_i32_0 : i32, i32
  }
  func.func @transform_2(%arg0: i32) -> (i32, i32) {
    %c0_i32 = arith.constant 0 : i32
    %c0_i32_0 = arith.constant 0 : i32
    %c0_i32_1 = arith.constant 0 : i32
    return %c0_i32, %c0_i32_0 : i32, i32
  }
  func.func @transform_3(%arg0: i32) -> (i32, i32) {
    %c0_i32 = arith.constant 0 : i32
    %c0_i32_0 = arith.constant 0 : i32
    %c0_i32_1 = arith.constant 0 : i32
    return %c0_i32, %c0_i32_0 : i32, i32
  }
  func.func @transform_4(%arg0: i32) -> i32 {
    %c0_i32 = arith.constant 0 : i32
    %c0_i32_0 = arith.constant 0 : i32
    return %c0_i32 : i32
  }
  func.func @transform_5(%arg0: i32) -> (i32, i32) {
    %c0_i32 = arith.constant 0 : i32
    %c0_i32_0 = arith.constant 0 : i32
    return %c0_i32, %arg0 : i32, i32
  }
  func.func @transform_6(%arg0: i32) -> (i32, i32) {
    %c0_i32 = arith.constant 0 : i32
    %c0_i32_0 = arith.constant 0 : i32
    return %c0_i32, %arg0 : i32, i32
  }
  func.func @transform_7(%arg0: i32) -> (i32, i32) {
    %c0_i32 = arith.constant 0 : i32
    %c0_i32_0 = arith.constant 0 : i32
    return %c0_i32, %arg0 : i32, i32
  }
}

</mosaic_0001>

<llo_original>
// kernel: tpu_custom_call.1
$region0: #{tpu_custom_call.1}
  #allocation0 [shape = 'u32[]', space=smem, size = 0x4, offset = 0x4, fixed_abs, tag = 'smem constant byte address 0x4 - core index']
  #allocation1 [shape = 'u32[144,128]{1,0:T(1,128)}', space=vmem, size = 0x12000, scoped, tag = 'internal scratch']
  #allocation2 [shape = 'f32[1]{0:T(128)S(6)}', space=smem, size = 0x200, scoped, tag = 'scoped memory for tpu_custom_call.1']
  %s0 = inlined_call_operand.hbm [shape: bf16[64,1024], index: 0, kind: input, shape index: {}]
  %s1 = inlined_call_operand.vmem [shape: bf16[32,64], index: 1, kind: input, shape index: {}]
  %s2 = inlined_call_operand.vmem [shape: f32[32,1], index: 2, kind: input, shape index: {}]
  %s3 = inlined_call_operand.vmem [shape: f32[32,1], index: 3, kind: input, shape index: {}]
  %s4 = inlined_call_operand.<no memory space> [shape: f32[1], index: 4, kind: input, shape index: {}]
  %s5 = inlined_call_operand.vmem [shape: f32[1,1024], index: 5, kind: input, shape index: {}]
  %s6 = inlined_call_operand.vmem [shape: f32[1,1024], index: 6, kind: input, shape index: {}]
  %s7 = inlined_call_operand.hbm [shape: f32[1,1024], index: 7, kind: output, shape index: {}]
  %s8 = sld [smem:[#allocation0]]
  $region65: #{tpu_custom_call.1} parent=0
    _
  %s10 = ssub.s32 1, %s8
  %s11 = scalar_select 0, %s10, %s8
  %12 = sst [smem:[#allocation2]] %s4
  $region1: #{tpu_custom_call.1} parent=0
    #allocation3 [shape = 'u8[131072]{0}', space=vmem, size = 0x20000, scoped, tag = 'input window, operand 0']
    #allocation4 [shape = 's32[2]{0}', space=sflag, size = 0x8, scoped, tag = 'scoped memory for tpu_custom_call.1']
    #allocation5 [shape = 's32[2]{0}', space=sflag, size = 0x8, scoped, tag = 'scoped memory for tpu_custom_call.1']
    #allocation6 [shape = 'u8[4096]{0}', space=vmem, size = 0x1000, scoped, tag = 'output window, operand 0']
    %13 = vsyncpa [#allocation4], 0
    %s14 = scalar_lea.sflag [#allocation4], 1
    %15 = vsyncpa %s14, 0
    %16 = vsyncpa [#allocation5], 0
    %s17 = scalar_lea.sflag [#allocation5], 1
    %18 = vsyncpa %s17, 0
    loop: start=0, step=1, limit=4
    $region2: #{tpu_custom_call.1} parent=1 // loop_pre_header
      _
    $region3: #{tpu_custom_call.1} parent=1 // loop_header
      %s20 = sphi 0, %s24
      %p21 = scmp.ge.s32.totalorder %s20, 4
      %s30 = sphi 0, %s32
      %s33 = sphi 0, %s30
      %s34 = sphi 0, %s33
      %s50 = sphi 0, %s34
      %s54 = sphi 0, %s54
      %s56 = sphi 0, %s54
      %s57 = sphi 0, %s56
      %s71 = sphi 0, %s57
      %s75 = sphi 0, %s75
      %s77 = sphi 0, %s75
      %s78 = sphi 0, %s77
      %s92 = sphi 0, %s78
      %s96 = sphi 0, %s96
      %s98 = sphi 0, %s96
      %s99 = sphi 0, %s98
      %s113 = sphi 0, %s99
      %s117 = sphi 0, %s117
      %s119 = sphi 0, %s117
      %s120 = sphi 0, %s119
      %s134 = sphi 0, %s120
      %s140 = sphi 0, %s142
      %s143 = sphi 0, %s140
      %s144 = sphi 0, %s143
      %s160 = sphi 0, %s144
      %s166 = sphi 0, %s168
      %s169 = sphi 0, %s166
      %s170 = sphi 0, %s169
      %s186 = sphi 0, %s170
      %s192 = sphi 0, %s194
      %s195 = sphi 0, %s192
      %s196 = sphi 0, %s195
      %s212 = sphi 0, %s196
    $region4: #{tpu_custom_call.1} parent=1 // loop_header_branch
      %23 = sbr.rel (%p21) target = $region8
    $region5: #{tpu_custom_call.1} parent=1 // loop_body
      %s25 = ssub.s32 %s20, 1
      %s26 = ssub.s32 %s20, 2
      %s27 = sadd.s32 %s20, 1
      %s28 = ssub.s32 %s20, %s27
      %p29 = scmp.eq.s32.totalorder %s28, 0
      %s31 = sadd.s32 %s30, 1
      %s32 = scalar_select %p29, %s30, %s31
      %p35 = pneg %p29
      %p36 = scmp.eq.s32.totalorder %s20, 1
      %p37 = por %p35, %p36
      %p38 = scmp.ne.s32.totalorder %s30, %s33
      %p39 = scmp.eq.s32.totalorder %s20, 0
      %p40 = por %p38, %p39
      %p41 = scmp.ne.s32.totalorder %s30, %s33
      %p42 = scmp.eq.s32.totalorder %s25, 1
      %p43 = por %p41, %p42
      %p44 = scmp.ne.s32.totalorder %s33, %s34
      %p45 = scmp.eq.s32.totalorder %s25, 0
      %p46 = por %p44, %p45
      %p47 = scmp.ne.s32.totalorder %s33, %s34
      %p48 = scmp.eq.s32.totalorder %s26, 1
      %p49 = por %p47, %p48
      %p51 = scmp.ne.s32.totalorder %s34, %s50
      %p52 = scmp.eq.s32.totalorder %s26, 0
      %p53 = por %p51, %p52
      %s55 = sadd.s32 %s54, 1
      %p58 = scmp.eq.s32.totalorder %s20, 1
      %p59 = scmp.ne.s32.totalorder %s54, %s56
      %p60 = scmp.eq.s32.totalorder %s20, 0
      %p61 = por %p59, %p60
      %p62 = scmp.ne.s32.totalorder %s54, %s56
      %p63 = scmp.eq.s32.totalorder %s25, 1
      %p64 = por %p62, %p63
      %p65 = scmp.ne.s32.totalorder %s56, %s57
      %p66 = scmp.eq.s32.totalorder %s25, 0
      %p67 = por %p65, %p66
      %p68 = scmp.ne.s32.totalorder %s56, %s57
      %p69 = scmp.eq.s32.totalorder %s26, 1
      %p70 = por %p68, %p69
      %p72 = scmp.ne.s32.totalorder %s57, %s71
      %p73 = scmp.eq.s32.totalorder %s26, 0
      %p74 = por %p72, %p73
      %s76 = sadd.s32 %s75, 1
      %p79 = scmp.eq.s32.totalorder %s20, 1
      %p80 = scmp.ne.s32.totalorder %s75, %s77
      %p81 = scmp.eq.s32.totalorder %s20, 0
      %p82 = por %p80, %p81
      %p83 = scmp.ne.s32.totalorder %s75, %s77
      %p84 = scmp.eq.s32.totalorder %s25, 1
      %p85 = por %p83, %p84
      %p86 = scmp.ne.s32.totalorder %s77, %s78
      %p87 = scmp.eq.s32.totalorder %s25, 0
      %p88 = por %p86, %p87
      %p89 = scmp.ne.s32.totalorder %s77, %s78
      %p90 = scmp.eq.s32.totalorder %s26, 1
      %p91 = por %p89, %p90
      %p93 = scmp.ne.s32.totalorder %s78, %s92
      %p94 = scmp.eq.s32.totalorder %s26, 0
      %p95 = por %p93, %p94
      %s97 = sadd.s32 %s96, 1
      %p100 = scmp.eq.s32.totalorder %s20, 1
      %p101 = scmp.ne.s32.totalorder %s96, %s98
      %p102 = scmp.eq.s32.totalorder %s20, 0
      %p103 = por %p101, %p102
      %p104 = scmp.ne.s32.totalorder %s96, %s98
      %p105 = scmp.eq.s32.totalorder %s25, 1
      %p106 = por %p104, %p105
      %p107 = scmp.ne.s32.totalorder %s98, %s99
      %p108 = scmp.eq.s32.totalorder %s25, 0
      %p109 = por %p107, %p108
      %p110 = scmp.ne.s32.totalorder %s98, %s99
      %p111 = scmp.eq.s32.totalorder %s26, 1
      %p112 = por %p110, %p111
      %p114 = scmp.ne.s32.totalorder %s99, %s113
      %p115 = scmp.eq.s32.totalorder %s26, 0
      %p116 = por %p114, %p115
      %s118 = sadd.s32 %s117, 1
      %p121 = scmp.eq.s32.totalorder %s20, 1
      %p122 = scmp.ne.s32.totalorder %s117, %s119
      %p123 = scmp.eq.s32.totalorder %s20, 0
      %p124 = por %p122, %p123
      %p125 = scmp.ne.s32.totalorder %s117, %s119
      %p126 = scmp.eq.s32.totalorder %s25, 1
      %p127 = por %p125, %p126
      %p128 = scmp.ne.s32.totalorder %s119, %s120
      %p129 = scmp.eq.s32.totalorder %s25, 0
      %p130 = por %p128, %p129
      %p131 = scmp.ne.s32.totalorder %s119, %s120
      %p132 = scmp.eq.s32.totalorder %s26, 1
      %p133 = por %p131, %p132
      %p135 = scmp.ne.s32.totalorder %s120, %s134
      %p136 = scmp.eq.s32.totalorder %s26, 0
      %p137 = por %p135, %p136
      %s138 = ssub.s32 %s20, %s27
      %p139 = scmp.eq.s32.totalorder %s138, 0
      %s141 = sadd.s32 %s140, 1
      %s142 = scalar_select %p139, %s140, %s141
      %p145 = pneg %p139
      %p146 = scmp.eq.s32.totalorder %s20, 1
      %p147 = por %p145, %p146
      %p148 = scmp.ne.s32.totalorder %s140, %s143
      %p149 = scmp.eq.s32.totalorder %s20, 0
      %p150 = por %p148, %p149
      %p151 = scmp.ne.s32.totalorder %s140, %s143
      %p152 = scmp.eq.s32.totalorder %s25, 1
      %p153 = por %p151, %p152
      %p154 = scmp.ne.s32.totalorder %s143, %s144
      %p155 = scmp.eq.s32.totalorder %s25, 0
      %p156 = por %p154, %p155
      %p157 = scmp.ne.s32.totalorder %s143, %s144
      %p158 = scmp.eq.s32.totalorder %s26, 1
      %p159 = por %p157, %p158
      %p161 = scmp.ne.s32.totalorder %s144, %s160
      %p162 = scmp.eq.s32.totalorder %s26, 0
      %p163 = por %p161, %p162
      %s164 = ssub.s32 %s20, %s27
      %p165 = scmp.eq.s32.totalorder %s164, 0
      %s167 = sadd.s32 %s166, 1
      %s168 = scalar_select %p165, %s166, %s167
      %p171 = pneg %p165
      %p172 = scmp.eq.s32.totalorder %s20, 1
      %p173 = por %p171, %p172
      %p174 = scmp.ne.s32.totalorder %s166, %s169
      %p175 = scmp.eq.s32.totalorder %s20, 0
      %p176 = por %p174, %p175
      %p177 = scmp.ne.s32.totalorder %s166, %s169
      %p178 = scmp.eq.s32.totalorder %s25, 1
      %p179 = por %p177, %p178
      %p180 = scmp.ne.s32.totalorder %s169, %s170
      %p181 = scmp.eq.s32.totalorder %s25, 0
      %p182 = por %p180, %p181
      %p183 = scmp.ne.s32.totalorder %s169, %s170
      %p184 = scmp.eq.s32.totalorder %s26, 1
      %p185 = por %p183, %p184
      %p187 = scmp.ne.s32.totalorder %s170, %s186
      %p188 = scmp.eq.s32.totalorder %s26, 0
      %p189 = por %p187, %p188
      %s190 = ssub.s32 %s20, %s27
      %p191 = scmp.eq.s32.totalorder %s190, 0
      %s193 = sadd.s32 %s192, 1
      %s194 = scalar_select %p191, %s192, %s193
      %p197 = pneg %p191
      %p198 = scmp.eq.s32.totalorder %s20, 1
      %p199 = por %p197, %p198
      %p200 = scmp.ne.s32.totalorder %s192, %s195
      %p201 = scmp.eq.s32.totalorder %s20, 0
      %p202 = por %p200, %p201
      %p203 = scmp.ne.s32.totalorder %s192, %s195
      %p204 = scmp.eq.s32.totalorder %s25, 1
      %p205 = por %p203, %p204
      %p206 = scmp.ne.s32.totalorder %s195, %s196
      %p207 = scmp.eq.s32.totalorder %s25, 0
      %p208 = por %p206, %p207
      %p209 = scmp.ne.s32.totalorder %s195, %s196
      %p210 = scmp.eq.s32.totalorder %s26, 1
      %p211 = por %p209, %p210
      %p213 = scmp.ne.s32.totalorder %s196, %s212
      %p214 = scmp.eq.s32.totalorder %s26, 0
      %p215 = por %p213, %p214
      %p216 = scmp.le.s32.totalorder 1, %s20
      %p217 = scmp.lt.s32.totalorder %s20, 3
      %p218 = pnand %p216, %p217
      %p219 = pneg %p218
      // Predicated region
      $region9: #{tpu_custom_call.1} parent=5 // pred_check
        _
      $region10: #{tpu_custom_call.1} parent=5 // pred_check_branch
        %221 = sbr.rel (%p218) target = $region12
      $region11: #{tpu_custom_call.1} parent=5 // pred_region
        %s222 = ssub.s32 %s20, 1
        // Predicated region
        $region13: #{tpu_custom_call.1} parent=11 // pred_check
          %p223 = pneg %p67
        $region14: #{tpu_custom_call.1} parent=11 // pred_check_branch
          %225 = sbr.rel (%p223) target = $region16
        $region15: #{tpu_custom_call.1} parent=11 // pred_region
          _
        $region16: #{tpu_custom_call.1} parent=11 // pred_fallthru
          _
        // Predicated region
        $region17: #{tpu_custom_call.1} parent=11 // pred_check
          %p226 = pneg %p88
        $region18: #{tpu_custom_call.1} parent=11 // pred_check_branch
          %228 = sbr.rel (%p226) target = $region20
        $region19: #{tpu_custom_call.1} parent=11 // pred_region
          _
        $region20: #{tpu_custom_call.1} parent=11 // pred_fallthru
          _
        // Predicated region
        $region21: #{tpu_custom_call.1} parent=11 // pred_check
          %p229 = pneg %p109
        $region22: #{tpu_custom_call.1} parent=11 // pred_check_branch
          %231 = sbr.rel (%p229) target = $region24
        $region23: #{tpu_custom_call.1} parent=11 // pred_region
          _
        $region24: #{tpu_custom_call.1} parent=11 // pred_fallthru
          _
        // Predicated region
        $region25: #{tpu_custom_call.1} parent=11 // pred_check
          %p232 = pneg %p130
        $region26: #{tpu_custom_call.1} parent=11 // pred_check_branch
          %234 = sbr.rel (%p232) target = $region28
        $region27: #{tpu_custom_call.1} parent=11 // pred_region
          _
        $region28: #{tpu_custom_call.1} parent=11 // pred_fallthru
          _
      $region12: #{tpu_custom_call.1} parent=5 // pred_fallthru
        _
      %p235 = scmp.lt.s32.totalorder %s20, 2
      // Predicated region
      $region29: #{tpu_custom_call.1} parent=5 // pred_check
        %p236 = pneg %p235
      $region30: #{tpu_custom_call.1} parent=5 // pred_check_branch
        %238 = sbr.rel (%p236) target = $region32
      $region31: #{tpu_custom_call.1} parent=5 // pred_region
        // Predicated region
        $region33: #{tpu_custom_call.1} parent=31 // pred_check
          %p239 = pneg %p40
        $region34: #{tpu_custom_call.1} parent=31 // pred_check_branch
          %241 = sbr.rel (%p239) target = $region36
        $region35: #{tpu_custom_call.1} parent=31 // pred_region
          %s242 = sand.u32 %s30, 1
          %s243 = scalar_lea.sflag [#allocation4], %s242
          %s244 = sand.u32 %s30, 1
          %s245 = smul.addr %s244, 128
          %s246 = scalar_lea.vmem [#allocation3], %s245
          %s247 = smul.u32 4, %s20
          %s249 = ssub.s32 2048, 2048
          %250 = vsyncadd %s243, %s249
          %s251 = smul.addr %s247, 64
          %s252 = scalar_lea.hbm %s0, %s251
          %s253 = sshll.u32 %s246, 4
          %s254 = int_to_ptr.vmem [resolvable:$true] %s253
          %259 = dma.hbm_to_vmem [thread:$0]  %s252, 2048, %s254, %s243, 512, 256, 16
        $region36: #{tpu_custom_call.1} parent=31 // pred_fallthru
          _
        // Predicated region
        $region37: #{tpu_custom_call.1} parent=31 // pred_check
          %p260 = pneg %p150
        $region38: #{tpu_custom_call.1} parent=31 // pred_check_branch
          %262 = sbr.rel (%p260) target = $region40
        $region39: #{tpu_custom_call.1} parent=31 // pred_region
          %s263 = smul.u32 4, %s20
          %p264 = scmp.lt.s32.totalorder %s263, 7
          %s265 = scalar_select %p264, %s263, 7
          %s266 = scalar_lea.vmem %s5, %s265
          %s267 = smul.u32 4, %s20
        $region40: #{tpu_custom_call.1} parent=31 // pred_fallthru
          _
        // Predicated region
        $region41: #{tpu_custom_call.1} parent=31 // pred_check
          %p268 = pneg %p176
        $region42: #{tpu_custom_call.1} parent=31 // pred_check_branch
          %270 = sbr.rel (%p268) target = $region44
        $region43: #{tpu_custom_call.1} parent=31 // pred_region
          %s271 = smul.u32 4, %s20
          %p272 = scmp.lt.s32.totalorder %s271, 7
          %s273 = scalar_select %p272, %s271, 7
          %s274 = scalar_lea.vmem %s6, %s273
          %s275 = smul.u32 4, %s20
        $region44: #{tpu_custom_call.1} parent=31 // pred_fallthru
          _
      $region32: #{tpu_custom_call.1} parent=5 // pred_fallthru
        _
      %p276 = scmp.le.s32.totalorder 1, %s20
      %p277 = scmp.lt.s32.totalorder %s20, 3
      %p278 = pnand %p276, %p277
      %p279 = pneg %p278
      // Predicated region
      $region45: #{tpu_custom_call.1} parent=5 // pred_check
        _
      $region46: #{tpu_custom_call.1} parent=5 // pred_check_branch
        %281 = sbr.rel (%p278) target = $region48
      $region47: #{tpu_custom_call.1} parent=5 // pred_region
        %s282 = ssub.s32 %s20, 1
        %s283 = sand.u32 %s33, 1
        %s284 = scalar_lea.sflag [#allocation4], %s283
        %s285 = sand.u32 %s33, 1
        %s286 = smul.addr %s285, 128
        %s287 = scalar_lea.vmem [#allocation3], %s286
        // Predicated region
        $region49: #{tpu_custom_call.1} parent=47 // pred_check
          %p288 = pneg %p46
        $region50: #{tpu_custom_call.1} parent=47 // pred_check_branch
          %290 = sbr.rel (%p288) target = $region52
        $region51: #{tpu_custom_call.1} parent=47 // pred_region
          %291 = dma.done %s284, 2048
        $region52: #{tpu_custom_call.1} parent=47 // pred_fallthru
          _
        %s292 = sand.u32 %s33, 1
        %s293 = scalar_lea.sflag [#allocation4], %s292
        %s294 = sand.u32 %s33, 1
        %s295 = smul.addr %s294, 128
        %s296 = scalar_lea.vmem [#allocation3], %s295
        %p297 = pneg %p46
        %p298 = pneg %p43
        %p299 = pneg %p67
        %p300 = pneg %p64
        %p301 = pneg %p88
        %p302 = pneg %p85
        %p303 = pneg %p109
        %p304 = pneg %p106
        %p305 = pneg %p130
        %p306 = pneg %p127
        %s307 = smul.u32 4, %s25
        %p308 = scmp.lt.s32.totalorder %s307, 7
        %s309 = scalar_select %p308, %s307, 7
        %s310 = scalar_lea.vmem %s5, %s309
        %p311 = pneg %p156
        %p312 = pneg %p153
        %s313 = smul.u32 4, %s25
        %p314 = scmp.lt.s32.totalorder %s313, 7
        %s315 = scalar_select %p314, %s313, 7
        %s316 = scalar_lea.vmem %s6, %s315
        %p317 = pneg %p182
        %p318 = pneg %p179
        %p319 = pneg %p208
        %p320 = pneg %p205
        %s321 = sand.u32 %s195, 1
        %s322 = scalar_lea.sflag [#allocation5], %s321
        %s323 = sand.u32 %s195, 1
        %s324 = smul.addr %s323, 4
        %s325 = scalar_lea.vmem [#allocation6], %s324
        %s326 = smul.u32 4, %s25
        %s327 = smul.u32 4, %s25
        %p328 = scmp.lt.s32.totalorder %s327, 7
        %s329 = scalar_select %p328, %s327, 7
        %s330 = scalar_lea.vmem %s5, %s329
        %s331 = smul.u32 4, %s25
        %s332 = smul.u32 4, %s25
        %p333 = scmp.lt.s32.totalorder %s332, 7
        %s334 = scalar_select %p333, %s332, 7
        %s335 = scalar_lea.vmem %s6, %s334
        %s336 = smul.u32 4, %s25
        %s337 = smul.u32 4, %s25
        %v339 = vld [vmem:[%s1] sm:$0xf]
        %v340 = vld [vmem:[%s1 + $0x4] sm:$0xf]
        %v341 = vld [vmem:[%s1 + $0x8] sm:$0xf]
        %v342 = vld [vmem:[%s1 + $0xc] sm:$0xf]
        %v343 = vld [vmem:[%s287] sm:$0xff]
        %v344 = vld [vmem:[%s287 + $0x8] sm:$0xff]
        %v345 = vld [vmem:[%s287 + $0x10] sm:$0xff]
        %v346 = vld [vmem:[%s287 + $0x18] sm:$0xff]
        %v347 = vld [vmem:[%s287 + $0x20] sm:$0xff]
        %v348 = vld [vmem:[%s287 + $0x28] sm:$0xff]
        %v349 = vld [vmem:[%s287 + $0x30] sm:$0xff]
        %v350 = vld [vmem:[%s287 + $0x38] sm:$0xff]
        %v351 = vld [vmem:[%s287 + $0x40] sm:$0xff]
        %v352 = vld [vmem:[%s287 + $0x48] sm:$0xff]
        %v353 = vld [vmem:[%s287 + $0x50] sm:$0xff]
        %v354 = vld [vmem:[%s287 + $0x58] sm:$0xff]
        %v355 = vld [vmem:[%s287 + $0x60] sm:$0xff]
        %v356 = vld [vmem:[%s287 + $0x68] sm:$0xff]
        %v357 = vld [vmem:[%s287 + $0x70] sm:$0xff]
        %v358 = vld [vmem:[%s287 + $0x78] sm:$0xff]
        %v359 = vld [vmem:[%s2] sm:$0xff]
        %v360 = vld [vmem:[%s2 + $0x8] sm:$0xff]
        %v361 = vld [vmem:[%s2 + $0x10] sm:$0xff]
        %v362 = vld [vmem:[%s2 + $0x18] sm:$0xff]
        %364 = vset.pattern.permute.xlu0 0
        %365 = vperm.xlu0 %364, %v359
        %v366 = vpop.permute.xlu0 %365
        %369 = vset.pattern.permute.xlu0 0
        %370 = vperm.xlu0 %369, %v360
        %v371 = vpop.permute.xlu0 %370
        %374 = vset.pattern.permute.xlu0 0
        %375 = vperm.xlu0 %374, %v361
        %v376 = vpop.permute.xlu0 %375
        %379 = vset.pattern.permute.xlu0 0
        %380 = vperm.xlu0 %379, %v362
        %v381 = vpop.permute.xlu0 %380
        %v387 = vunpack.c.l.b16 %v339
        %v388 = vunpack.c.l.b16 %v340
        %v389 = vunpack.c.l.b16 %v341
        %v390 = vunpack.c.l.b16 %v342
        %v391 = vpack.c.b16 %v388, %v387
        %v392 = vpack.c.b16 %v390, %v389
        %v409 = vunpack.c.l.b16 %v343
        %v410 = vunpack.c.h.b16 %v343
        %v411 = vunpack.c.l.b16 %v344
        %v412 = vunpack.c.h.b16 %v344
        %v413 = vunpack.c.l.b16 %v345
        %v414 = vunpack.c.h.b16 %v345
        %v415 = vunpack.c.l.b16 %v346
        %v416 = vunpack.c.h.b16 %v346
        %v417 = vunpack.c.l.b16 %v347
        %v418 = vunpack.c.h.b16 %v347
        %v419 = vunpack.c.l.b16 %v348
        %v420 = vunpack.c.h.b16 %v348
        %v421 = vunpack.c.l.b16 %v349
        %v422 = vunpack.c.h.b16 %v349
        %v423 = vunpack.c.l.b16 %v350
        %v424 = vunpack.c.h.b16 %v350
        %v425 = vunpack.c.l.b16 %v351
        %v426 = vunpack.c.h.b16 %v351
        %v427 = vunpack.c.l.b16 %v352
        %v428 = vunpack.c.h.b16 %v352
        %v429 = vunpack.c.l.b16 %v353
        %v430 = vunpack.c.h.b16 %v353
        %v431 = vunpack.c.l.b16 %v354
        %v432 = vunpack.c.h.b16 %v354
        %v433 = vunpack.c.l.b16 %v355
        %v434 = vunpack.c.h.b16 %v355
        %v435 = vunpack.c.l.b16 %v356
        %v436 = vunpack.c.h.b16 %v356
        %v437 = vunpack.c.l.b16 %v357
        %v438 = vunpack.c.h.b16 %v357
        %v439 = vunpack.c.l.b16 %v358
        %v440 = vunpack.c.h.b16 %v358
        %v441 = vpack.c.b16 %v413, %v409
        %v442 = vpack.c.b16 %v414, %v410
        %v443 = vpack.c.b16 %v415, %v411
        %v444 = vpack.c.b16 %v416, %v412
        %v445 = vpack.c.b16 %v421, %v417
        %v446 = vpack.c.b16 %v422, %v418
        %v447 = vpack.c.b16 %v423, %v419
        %v448 = vpack.c.b16 %v424, %v420
        %v449 = vpack.c.b16 %v429, %v425
        %v450 = vpack.c.b16 %v430, %v426
        %v451 = vpack.c.b16 %v431, %v427
        %v452 = vpack.c.b16 %v432, %v428
        %v453 = vpack.c.b16 %v437, %v433
        %v454 = vpack.c.b16 %v438, %v434
        %v455 = vpack.c.b16 %v439, %v435
        %v456 = vpack.c.b16 %v440, %v436
        %vm473 = vcmask 523264
        %v475 = vsel %vm473, %v391, 0
        %v478 = vsel %vm473, %v392, 0
        %480 = vmatprep.subr.bf16.mxu0 0
        %481 = vmatpush1.bf16.msra.mxu0 0
        %482 = vmatprep.subr.bf16.mxu0 0
        %483 = vmatpush1.bf16.msra.mxu0 0
        %484 = vmatprep.subr.bf16.mxu0 0
        %485 = vmatpush1.bf16.msra.mxu0 0
        %486 = vmatprep.subr.bf16.mxu0 0
        %487 = vmatpush1.bf16.msra.mxu0 0
        %488 = vmatprep.subr.bf16.mxu0 %v454
        %489 = vmatpush1.bf16.msra.mxu0 %v453
        %490 = vmatprep.subr.bf16.mxu0 %v450
        %491 = vmatpush1.bf16.msra.mxu0 %v449
        %492 = vmatprep.subr.bf16.mxu0 %v446
        %493 = vmatpush1.bf16.msra.mxu0 %v445
        %494 = vmatprep.subr.bf16.mxu0 %v442
        %495 = vmatpush1.bf16.msra.mxu0 %v441
        %496 = vmatprep.subr.bf16.mxu0 0
        %497 = vmatpush2.bf16.msra.mxu0 0
        %498 = vmatprep.subr.bf16.mxu0 0
        %499 = vmatpush2.bf16.msra.mxu0 0
        %500 = vmatprep.subr.bf16.mxu0 0
        %501 = vmatpush2.bf16.msra.mxu0 0
        %502 = vmatprep.subr.bf16.mxu0 0
        %503 = vmatpush2.bf16.msra.mxu0 0
        %504 = vmatprep.subr.bf16.mxu0 0
        %505 = vmatpush2.bf16.msra.mxu0 0
        %506 = vmatprep.subr.bf16.mxu0 0
        %507 = vmatpush2.bf16.msra.mxu0 0
        %508 = vmatprep.subr.bf16.mxu0 0
        %509 = vmatpush2.bf16.msra.mxu0 0
        %510 = vmatprep.subr.bf16.mxu0 0
        %511 = vmatpush2.bf16.msra.mxu0 0
        %512 = vmatprep.mubr.bf16.mxu0 0
        %513 = vmatmul.mubr.bf16.gmra.mxu0 %v475
        %v514 = vpop.f32.mrf.mxu0
        %v515 = vadd.f32 %v366, %v514
        %v516 = vpop.f32.mrf.mxu0
        %v517 = vadd.f32 %v366, %v516
        %v518 = vpop.f32.mrf.mxu0
        %v519 = vadd.f32 %v371, %v518
        %v520 = vpop.f32.mrf.mxu0
        %v521 = vadd.f32 %v371, %v520
        %522 = vmatprep.mubr.bf16.mxu0 0
        %523 = vmatmul.mubr.bf16.gmra.mxu0 %v478
        %v524 = vpop.f32.mrf.mxu0
        %v525 = vadd.f32 %v376, %v524
        %v526 = vpop.f32.mrf.mxu0
        %v527 = vadd.f32 %v376, %v526
        %v528 = vpop.f32.mrf.mxu0
        %v529 = vadd.f32 %v381, %v528
        %v530 = vpop.f32.mrf.mxu0
        %v531 = vadd.f32 %v381, %v530
        %532 = vdwg.mxu0
        %533 = vmatprep.subr.bf16.mxu0 0
        %534 = vmatpush1.bf16.msra.mxu0 0
        %535 = vmatprep.subr.bf16.mxu0 0
        %536 = vmatpush1.bf16.msra.mxu0 0
        %537 = vmatprep.subr.bf16.mxu0 0
        %538 = vmatpush1.bf16.msra.mxu0 0
        %539 = vmatprep.subr.bf16.mxu0 0
        %540 = vmatpush1.bf16.msra.mxu0 0
        %541 = vmatprep.subr.bf16.mxu0 %v456
        %542 = vmatpush1.bf16.msra.mxu0 %v455
        %543 = vmatprep.subr.bf16.mxu0 %v452
        %544 = vmatpush1.bf16.msra.mxu0 %v451
        %545 = vmatprep.subr.bf16.mxu0 %v448
        %546 = vmatpush1.bf16.msra.mxu0 %v447
        %547 = vmatprep.subr.bf16.mxu0 %v444
        %548 = vmatpush1.bf16.msra.mxu0 %v443
        %549 = vmatprep.subr.bf16.mxu0 0
        %550 = vmatpush2.bf16.msra.mxu0 0
        %551 = vmatprep.subr.bf16.mxu0 0
        %552 = vmatpush2.bf16.msra.mxu0 0
        %553 = vmatprep.subr.bf16.mxu0 0
        %554 = vmatpush2.bf16.msra.mxu0 0
        %555 = vmatprep.subr.bf16.mxu0 0
        %556 = vmatpush2.bf16.msra.mxu0 0
        %557 = vmatprep.subr.bf16.mxu0 0
        %558 = vmatpush2.bf16.msra.mxu0 0
        %559 = vmatprep.subr.bf16.mxu0 0
        %560 = vmatpush2.bf16.msra.mxu0 0
        %561 = vmatprep.subr.bf16.mxu0 0
        %562 = vmatpush2.bf16.msra.mxu0 0
        %563 = vmatprep.subr.bf16.mxu0 0
        %564 = vmatpush2.bf16.msra.mxu0 0
        %565 = vmatprep.mubr.bf16.mxu0 0
        %566 = vmatmul.mubr.bf16.gmra.mxu0 %v475
        %v567 = vpop.f32.mrf.mxu0
        %v568 = vadd.f32 %v366, %v567
        %v569 = vpop.f32.mrf.mxu0
        %v570 = vadd.f32 %v366, %v569
        %v571 = vpop.f32.mrf.mxu0
        %v572 = vadd.f32 %v371, %v571
        %v573 = vpop.f32.mrf.mxu0
        %v574 = vadd.f32 %v371, %v573
        %575 = vmatprep.mubr.bf16.mxu0 0
        %576 = vmatmul.mubr.bf16.gmra.mxu0 %v478
        %v577 = vpop.f32.mrf.mxu0
        %v578 = vadd.f32 %v376, %v577
        %v579 = vpop.f32.mrf.mxu0
        %v580 = vadd.f32 %v376, %v579
        %v581 = vpop.f32.mrf.mxu0
        %v582 = vadd.f32 %v381, %v581
        %v583 = vpop.f32.mrf.mxu0
        %v584 = vadd.f32 %v381, %v583
        %585 = vdwg.mxu0
        %v586 = vmax.f32 %v515, 0.0
        %v587 = vmax.f32 %v517, 0.0
        %v588 = vmax.f32 %v568, 0.0
        %v589 = vmax.f32 %v570, 0.0
        %v590 = vmax.f32 %v519, 0.0
        %v591 = vmax.f32 %v521, 0.0
        %v592 = vmax.f32 %v572, 0.0
        %v593 = vmax.f32 %v574, 0.0
        %v594 = vmax.f32 %v525, 0.0
        %v595 = vmax.f32 %v527, 0.0
        %v596 = vmax.f32 %v578, 0.0
        %v597 = vmax.f32 %v580, 0.0
        %v598 = vmax.f32 %v529, 0.0
        %v599 = vmax.f32 %v531, 0.0
        %v600 = vmax.f32 %v582, 0.0
        %v601 = vmax.f32 %v584, 0.0
        %v602 = vld [vmem:[%s3] sm:$0xff]
        %v603 = vld [vmem:[%s3 + $0x8] sm:$0xff]
        %v604 = vld [vmem:[%s3 + $0x10] sm:$0xff]
        %v605 = vld [vmem:[%s3 + $0x18] sm:$0xff]
        %607 = vset.pattern.permute.xlu0 0
        %608 = vperm.xlu0 %607, %v602
        %v609 = vpop.permute.xlu0 %608
        %612 = vset.pattern.permute.xlu0 0
        %613 = vperm.xlu0 %612, %v603
        %v614 = vpop.permute.xlu0 %613
        %617 = vset.pattern.permute.xlu0 0
        %618 = vperm.xlu0 %617, %v604
        %v619 = vpop.permute.xlu0 %618
        %622 = vset.pattern.permute.xlu0 0
        %623 = vperm.xlu0 %622, %v605
        %v624 = vpop.permute.xlu0 %623
        %v626 = vmul.f32 %v586, %v609
        %v627 = vmul.f32 %v587, %v609
        %v628 = vmul.f32 %v588, %v609
        %v629 = vmul.f32 %v589, %v609
        %v630 = vmul.f32 %v590, %v614
        %v631 = vmul.f32 %v591, %v614
        %v632 = vmul.f32 %v592, %v614
        %v633 = vmul.f32 %v593, %v614
        %v634 = vmul.f32 %v594, %v619
        %v635 = vmul.f32 %v595, %v619
        %v636 = vmul.f32 %v596, %v619
        %v637 = vmul.f32 %v597, %v619
        %v638 = vmul.f32 %v598, %v624
        %v639 = vmul.f32 %v599, %v624
        %v640 = vmul.f32 %v600, %v624
        %v641 = vmul.f32 %v601, %v624
        %v642 = vadd.f32 %v626, %v630
        %v643 = vadd.f32 %v642, %v634
        %v644 = vadd.f32 %v643, %v638
        %v645 = vrot.slane %v644, 4
        %v646 = vadd.f32 %v644, %v645
        %v647 = vrot.slane %v646, 2
        %v648 = vadd.f32 %v646, %v647
        %v649 = vrot.slane %v648, 1
        %v650 = vadd.f32 %v648, %v649
        %v651 = vadd.f32 %v627, %v631
        %v652 = vadd.f32 %v651, %v635
        %v653 = vadd.f32 %v652, %v639
        %v654 = vrot.slane %v653, 4
        %v655 = vadd.f32 %v653, %v654
        %v656 = vrot.slane %v655, 2
        %v657 = vadd.f32 %v655, %v656
        %v658 = vrot.slane %v657, 1
        %v659 = vadd.f32 %v657, %v658
        %v660 = vadd.f32 %v628, %v632
        %v661 = vadd.f32 %v660, %v636
        %v662 = vadd.f32 %v661, %v640
        %v663 = vrot.slane %v662, 4
        %v664 = vadd.f32 %v662, %v663
        %v665 = vrot.slane %v664, 2
        %v666 = vadd.f32 %v664, %v665
        %v667 = vrot.slane %v666, 1
        %v668 = vadd.f32 %v666, %v667
        %v669 = vadd.f32 %v629, %v633
        %v670 = vadd.f32 %v669, %v637
        %v671 = vadd.f32 %v670, %v641
        %v672 = vrot.slane %v671, 4
        %v673 = vadd.f32 %v671, %v672
        %v674 = vrot.slane %v673, 2
        %v675 = vadd.f32 %v673, %v674
        %v676 = vrot.slane %v675, 1
        %v677 = vadd.f32 %v675, %v676
        %s678 = sld [smem:[#allocation2]]
        %v679 = vstv %s678
        %v680 = vadd.f32 %v650, %v679
        %v681 = vadd.f32 %v659, %v679
        %v682 = vadd.f32 %v668, %v679
        %v683 = vadd.f32 %v677, %v679
        %v684 = vld [vmem:[%s330] sm:$0xf]
        %v686 = vlaneseq
        %v687 = vshrl.u32 %v686, 7
        %v688 = vsub.s32 0, %v687
        %v689 = vrot.slane %v684, %v688
        %v690 = vlaneseq
        %v691 = vshrl.u32 %v690, 7
        %v692 = vsub.s32 1, %v691
        %v693 = vrot.slane %v684, %v692
        %v694 = vlaneseq
        %v695 = vshrl.u32 %v694, 7
        %v696 = vsub.s32 2, %v695
        %v697 = vrot.slane %v684, %v696
        %v698 = vlaneseq
        %v699 = vshrl.u32 %v698, 7
        %v700 = vsub.s32 3, %v699
        %v701 = vrot.slane %v684, %v700
        %v706 = vadd.f32 %v680, %v689
        %v707 = vadd.f32 %v681, %v693
        %v708 = vadd.f32 %v682, %v697
        %v709 = vadd.f32 %v683, %v701
        %v710 = vmax.f32 %v706, -4.59512
        %v711 = vmax.f32 %v707, -4.59512
        %v712 = vmax.f32 %v708, -4.59512
        %v713 = vmax.f32 %v709, -4.59512
        %v714 = vmin.f32 %v710, 4.59512
        %v715 = vmin.f32 %v711, 4.59512
        %v716 = vmin.f32 %v712, 4.59512
        %v717 = vmin.f32 %v713, 4.59512
        %v718 = vld [vmem:[%s335] sm:$0xf]
        %v720 = vlaneseq
        %v721 = vshrl.u32 %v720, 7
        %v722 = vsub.s32 0, %v721
        %v723 = vrot.slane %v718, %v722
        %v724 = vlaneseq
        %v725 = vshrl.u32 %v724, 7
        %v726 = vsub.s32 1, %v725
        %v727 = vrot.slane %v718, %v726
        %v728 = vlaneseq
        %v729 = vshrl.u32 %v728, 7
        %v730 = vsub.s32 2, %v729
        %v731 = vrot.slane %v718, %v730
        %v732 = vlaneseq
        %v733 = vshrl.u32 %v732, 7
        %v734 = vsub.s32 3, %v733
        %v735 = vrot.slane %v718, %v734
        %v740 = vadd.f32 %v714, %v723
        %v741 = vadd.f32 %v715, %v727
        %v742 = vadd.f32 %v716, %v731
        %v743 = vadd.f32 %v717, %v735
        %v744 = vmul.f32 %v740, 1.1111112
        %v745 = vmul.f32 %v741, 1.1111112
        %v746 = vmul.f32 %v742, 1.1111112
        %v747 = vmul.f32 %v743, 1.1111112
        %v748 = vxor.u32 %v744, 2147483648
        %v749 = vxor.u32 %v745, 2147483648
        %v750 = vxor.u32 %v746, 2147483648
        %v751 = vxor.u32 %v747, 2147483648
        %v752 = vmul.f32 %v748, 1.442695
        %v753 = vpow.pop %v752
        %v754 = vmul.f32 %v749, 1.442695
        %v755 = vpow.pop %v754
        %v756 = vmul.f32 %v750, 1.442695
        %v757 = vpow.pop %v756
        %v758 = vmul.f32 %v751, 1.442695
        %v759 = vpow.pop %v758
        %v760 = vadd.f32 %v753, 1.0
        %v761 = vadd.f32 %v755, 1.0
        %v762 = vadd.f32 %v757, 1.0
        %v763 = vadd.f32 %v759, 1.0
        %v764 = vrcp.pop %v760
        %v765 = vmul.f32 1.0, %v764
        %v766 = vrcp.pop %v761
        %v767 = vmul.f32 1.0, %v766
        %v768 = vrcp.pop %v762
        %v769 = vmul.f32 1.0, %v768
        %v770 = vrcp.pop %v763
        %v771 = vmul.f32 1.0, %v770
        %v776 = vcombine.low %v765, %v767
        %v777 = vcombine.low %v769, %v771
        %v779 = vunpack.c.l.s4 1966171168
        %v780 = vunpack.c.0.s8 %v779
        %v781 = vlaneseq
        %v782 = vshrl.u32 %v781, 7
        %v783 = vsub.s32 %v780, %v782
        %v784 = vrot.slane %v776, %v783
        %v786 = vunpack.c.l.s4 1966171168
        %v787 = vunpack.c.0.s8 %v786
        %v788 = vlaneseq
        %v789 = vshrl.u32 %v788, 7
        %v790 = vsub.s32 %v787, %v789
        %v791 = vrot.slane %v777, %v790
        %v792 = vcombine.low %v784, %v791
        %v794 = vunpack.c.l.s4 1966171168
        %v795 = vunpack.c.0.s8 %v794
        %v796 = vlaneseq
        %v797 = vshrl.u32 %v796, 7
        %v798 = vsub.s32 %v795, %v797
        %v799 = vrot.slane %v792, %v798
        %v801 = vlaneseq
        %vm802 = vcmp.ge.s32.totalorder %v801, 0
        %vm803 = vcmp.lt.s32.totalorder %v801, 512
        %vm804 = vmand %vm802, %vm803
        %805 = vst.msk [vmem:[%s325] sm:$0xf] %vm804, %v799
        %s806 = sand.u32 %s195, 1
        %s807 = scalar_lea.sflag [#allocation5], %s806
        %s808 = sand.u32 %s195, 1
        %s809 = smul.addr %s808, 4
        %s810 = scalar_lea.vmem [#allocation6], %s809
        // Predicated region
        $region53: #{tpu_custom_call.1} parent=47 // pred_check
          %p811 = pneg %p205
        $region54: #{tpu_custom_call.1} parent=47 // pred_check_branch
          %813 = sbr.rel (%p811) target = $region56
        $region55: #{tpu_custom_call.1} parent=47 // pred_region
          %s814 = smul.u32 4, %s25
          %s816 = ssub.s32 64, 64
          %817 = vsyncadd %s807, %s816
          %s818 = smul.addr %s814, 16
          %s819 = scalar_lea.hbm %s7, %s818
          %s821 = sshll.u32 %s810, 4
          %s822 = int_to_ptr.vmem [resolvable:$true] %s821
          %824 = dma.vmem_to_hbm [thread:$0]  %s822, 64, %s819, %s807
        $region56: #{tpu_custom_call.1} parent=47 // pred_fallthru
          _
      $region48: #{tpu_custom_call.1} parent=5 // pred_fallthru
        _
      %p825 = scmp.le.s32.totalorder 2, %s20
      // Predicated region
      $region57: #{tpu_custom_call.1} parent=5 // pred_check
        %p826 = pneg %p825
      $region58: #{tpu_custom_call.1} parent=5 // pred_check_branch
        %828 = sbr.rel (%p826) target = $region60
      $region59: #{tpu_custom_call.1} parent=5 // pred_region
        %s829 = ssub.s32 %s20, 2
        // Predicated region
        $region61: #{tpu_custom_call.1} parent=59 // pred_check
          %p830 = pneg %p211
        $region62: #{tpu_custom_call.1} parent=59 // pred_check_branch
          %832 = sbr.rel (%p830) target = $region64
        $region63: #{tpu_custom_call.1} parent=59 // pred_region
          %s833 = sand.u32 %s196, 1
          %s834 = scalar_lea.sflag [#allocation5], %s833
          %s835 = sand.u32 %s196, 1
          %s836 = smul.addr %s835, 4
          %s837 = scalar_lea.vmem [#allocation6], %s836
          %838 = dma.done %s834, 64
        $region64: #{tpu_custom_call.1} parent=59 // pred_fallthru
          _
      $region60: #{tpu_custom_call.1} parent=5 // pred_fallthru
        _
    $region6: #{tpu_custom_call.1} parent=1 // loop_footer
      %s24 = sadd.s32 1, %s20
    $region7: #{tpu_custom_call.1} parent=1 // loop_footer_branch
      %19 = sbr.rel target = $region3
    $region8: #{tpu_custom_call.1} parent=1 // loop_exit
      _
    %839 = vsyncpa [#allocation4], 1
    %s840 = scalar_lea.sflag [#allocation4], 1
    %841 = vsyncpa %s840, 1
    %842 = vsyncpa [#allocation5], 1
    %s843 = scalar_lea.sflag [#allocation5], 1
    %844 = vsyncpa %s843, 1

</llo_original>
